<compile_context>
chip_gen: v5e
topology: v5e:2x2
jax: 0.10.0
libtpu: 0.0.40
codegen_flags: <defaults>
</compile_context>

<pallas_src>
import functools

import jax
import jax.numpy as jnp
from jax.experimental import pallas as pl
from jax.experimental.pallas import tpu as pltpu


_TB_MAX = 256 * 1024          # cap the batch tile: ~25 MB of streams on v7x
_LANE = 128


def _qnet_kernel(x_ref, w1_ref, b1_ref, w2_ref, b2_ref,
                 w3a_ref, w3b_ref, b3_ref, out_ref):
    # Feature-major layout: batch on lanes.
    x = x_ref[...]                                                    # (S, TB)
    h1 = jnp.tanh(
        jnp.dot(w1_ref[...], x, preferred_element_type=jnp.float32)
        + b1_ref[...])                                                # (H, TB)
    h2 = jnp.tanh(
        jnp.dot(w2_ref[...], h1, preferred_element_type=jnp.float32)
        + b2_ref[...])                                                # (H, TB)
    # concat([x, h2]) @ W3^T  ==  W3a @ x + W3b @ h2   (W3 = [W3a | W3b])
    q = (jnp.dot(w3a_ref[...], x, preferred_element_type=jnp.float32)
         + jnp.dot(w3b_ref[...], h2, preferred_element_type=jnp.float32)
         + b3_ref[...])                                               # (A, TB)
    out_ref[...] = q


def _round_up(n, m):
    return ((n + m - 1) // m) * m


def _forward_fm_impl(x_t, params, block_batch):
    """Feature-major core: x_t (S, B) f32 -> (A, B) f32."""
    S, B = x_t.shape
    H = params["w1"].shape[0]
    A = params["w3a"].shape[0]

    # Pad batch only to lane alignment (<=127 extra columns), never to tb.
    b_pad = _round_up(B, _LANE)
    if b_pad != B:
        x_t = jnp.pad(x_t, ((0, 0), (0, b_pad - B)))

    # Batch tile: lane-aligned, large by default, capped for v7x VMEM.
    tb = min(_round_up(max(block_batch, _LANE), _LANE), b_pad, _TB_MAX)
    grid = (pl.cdiv(b_pad, tb),)       # ragged tail block is masked by Pallas

    # Explicit VMEM budget: double-buffered x/q streams + resident weights.
    stream_bytes = 2 * (S + A) * 4 * tb
    vmem_limit = min(56 * 1024 * 1024,                       # v7x headroom
                     max(32 * 1024 * 1024, stream_bytes + (8 << 20)))

    w_spec = lambda shape: pl.BlockSpec(shape, lambda i: (0, 0))   # resident

    out_t = pl.pallas_call(
        _qnet_kernel,
        out_shape=jax.ShapeDtypeStruct((A, b_pad), jnp.float32),
        grid=grid,
        in_specs=[
            pl.BlockSpec((S, tb), lambda i: (0, i)),   # x tile (streamed)
            w_spec((H, S)),                            # w1
            w_spec((H, 1)),                            # b1
            w_spec((H, H)),                            # w2
            w_spec((H, 1)),                            # b2
            w_spec((A, S)),                            # w3a (multiplies x)
            w_spec((A, H)),                            # w3b (multiplies h2)
            w_spec((A, 1)),                            # b3
        ],
        out_specs=pl.BlockSpec((A, tb), lambda i: (0, i)),
        compiler_params=pltpu.CompilerParams(
            dimension_semantics=("parallel",),
            vmem_limit_bytes=vmem_limit),
    )(x_t, params["w1"], params["b1"], params["w2"], params["b2"],
      params["w3a"], params["w3b"], params["b3"])

    return out_t[:, :B]                                               # (A, B)


@functools.partial(jax.jit, static_argnames=("block_batch",))
def qnetwork_forward_fm(x_t, params, *, block_batch=131072):
    """Feature-major entrypoint: x_t (S, B) -> (A, B).  No wrapper transposes."""
    return _forward_fm_impl(x_t, params, block_batch)


@functools.partial(jax.jit, static_argnames=("block_batch",))
def qnetwork_forward(x, params, *, block_batch=131072):
    """Batch-major entrypoint: x (B, state_size) -> (B, action_size).
    Pays one transpose pass each way; use qnetwork_forward_fm to avoid it."""
    q_t = _forward_fm_impl(x.T, params, block_batch)
    return q_t.T                                                      # (B, A)


def init_params(key, state_size=8, action_size=4, hidden_size=10):
    """nn.Linear-style init: U(-1/sqrt(fan_in), 1/sqrt(fan_in)).
    Weights in PyTorch (out_features, in_features) layout; biases (out, 1)."""
    ks = jax.random.split(key, 6)

    def lin(kw, kb, fan_in, fan_out):
        bound = 1.0 / jnp.sqrt(fan_in)
        w = jax.random.uniform(kw, (fan_out, fan_in), jnp.float32, -bound, bound)
        b = jax.random.uniform(kb, (fan_out, 1), jnp.float32, -bound, bound)
        return w, b

    w1, b1 = lin(ks[0], ks[1], state_size, hidden_size)
    w2, b2 = lin(ks[2], ks[3], hidden_size, hidden_size)
    w3, b3 = lin(ks[4], ks[5], state_size + hidden_size, action_size)
    return {
        "w1": w1, "b1": b1,
        "w2": w2, "b2": b2,
        "w3a": w3[:, :state_size],    # part multiplying x_input
        "w3b": w3[:, state_size:],    # part multiplying h2
        "b3": b3,
    }


def qnetwork_ref(x, p):
    """Pure-JAX reference in natural (batch, features) layout."""
    h1 = jnp.tanh(x @ p["w1"].T + p["b1"].T)
    h2 = jnp.tanh(h1 @ p["w2"].T + p["b2"].T)
    cat = jnp.concatenate([x, h2], axis=1)
    w3 = jnp.concatenate([p["w3a"], p["w3b"]], axis=1)
    return cat @ w3.T + p["b3"].T


if __name__ == "__main__":
    key = jax.random.PRNGKey(0)
    k_params, k_x = jax.random.split(key)

    state_size, action_size, hidden_size = 8, 4, 10
    batch = 2

    params = init_params(k_params, state_size, action_size, hidden_size)
    x = jax.random.normal(k_x, (batch, state_size), jnp.float32)

    q = jax.block_until_ready(qnetwork_forward(x, params))
    q_ref = qnetwork_ref(x, params)
    assert q.shape == (batch, action_size)
    assert jnp.allclose(q, q_ref, atol=1e-5, rtol=1e-5)

    # Multi-tile grid with a ragged tail block (B=300 -> b_pad=384, tb=256,
    # grid=2, last block masked) exercises the no-full-pad path.
    xb = jax.random.normal(jax.random.PRNGKey(1), (300, state_size), jnp.float32)
    qb = jax.block_until_ready(qnetwork_forward(xb, params, block_batch=256))
    assert qb.shape == (300, action_size)
    assert jnp.allclose(qb, qnetwork_ref(xb, params), atol=1e-5, rtol=1e-5)

    # Feature-major entrypoint (no wrapper transpose passes).
    qt = jax.block_until_ready(qnetwork_forward_fm(xb.T, params, block_batch=128))
    assert qt.shape == (action_size, 300)
    assert jnp.allclose(qt.T, qnetwork_ref(xb, params), atol=1e-5, rtol=1e-5)

    print("KERNEL_OK")
</pallas_src>

<mosaic_0001>
module attributes {stable_mosaic.version = 11 : i64} {
  func.func @_qnet_kernel(%arg0: i32, %arg1: memref<8x128xf32, #tpu.memory_space<vmem>>, %arg2: memref<10x8xf32, #tpu.memory_space<vmem>>, %arg3: memref<10x1xf32, #tpu.memory_space<vmem>>, %arg4: memref<10x10xf32, #tpu.memory_space<vmem>>, %arg5: memref<10x1xf32, #tpu.memory_space<vmem>>, %arg6: memref<4x8xf32, #tpu.memory_space<vmem>>, %arg7: memref<4x10xf32, #tpu.memory_space<vmem>>, %arg8: memref<4x1xf32, #tpu.memory_space<vmem>>, %arg9: memref<4x128xf32, #tpu.memory_space<vmem>>) attributes {dimension_semantics = [#tpu.dimension_semantics<parallel>], iteration_bounds = array<i64: 1>, scalar_prefetch = 0 : i64, scratch_operands = 0 : i64, tpu.core_type = #tpu.core_type<tc>, window_params = [{transform_indices = @transform_0, window_bounds = array<i64: 8, 128>}, {pipeline_mode = #tpu.pipeline_mode<synchronous>, transform_indices = @transform_1, window_bounds = array<i64: 10, 8>}, {pipeline_mode = #tpu.pipeline_mode<synchronous>, transform_indices = @transform_2, window_bounds = array<i64: 10, 1>}, {pipeline_mode = #tpu.pipeline_mode<synchronous>, transform_indices = @transform_3, window_bounds = array<i64: 10, 10>}, {pipeline_mode = #tpu.pipeline_mode<synchronous>, transform_indices = @transform_4, window_bounds = array<i64: 10, 1>}, {pipeline_mode = #tpu.pipeline_mode<synchronous>, transform_indices = @transform_5, window_bounds = array<i64: 4, 8>}, {pipeline_mode = #tpu.pipeline_mode<synchronous>, transform_indices = @transform_6, window_bounds = array<i64: 4, 10>}, {pipeline_mode = #tpu.pipeline_mode<synchronous>, transform_indices = @transform_7, window_bounds = array<i64: 4, 1>}, {transform_indices = @transform_8, window_bounds = array<i64: 4, 128>}]} {
    %c0 = arith.constant 0 : index
    %c0_0 = arith.constant 0 : index
    %0 = vector.load %arg1[%c0, %c0_0] : memref<8x128xf32, #tpu.memory_space<vmem>>, vector<8x128xf32>
    %c0_1 = arith.constant 0 : index
    %c0_2 = arith.constant 0 : index
    %1 = vector.load %arg2[%c0_1, %c0_2] : memref<10x8xf32, #tpu.memory_space<vmem>>, vector<10x8xf32>
    %cst = arith.constant dense<0.000000e+00> : vector<10x128xf32>
    %2 = tpu.matmul %1, %0, %cst {dimension_numbers = #tpu.dot_dimension_numbers<[1], [0], [0], [1], [0, 0, 1, 1], [], []>} : vector<10x8xf32>, vector<8x128xf32>, vector<10x128xf32> -> vector<10x128xf32>
    %c0_3 = arith.constant 0 : index
    %c0_4 = arith.constant 0 : index
    %3 = vector.load %arg3[%c0_3, %c0_4] : memref<10x1xf32, #tpu.memory_space<vmem>>, vector<10x1xf32>
    %4 = vector.broadcast %3 : vector<10x1xf32> to vector<10x128xf32>
    %5 = arith.addf %2, %4 : vector<10x128xf32>
    %6 = math.tanh %5 : vector<10x128xf32>
    %c0_5 = arith.constant 0 : index
    %c0_6 = arith.constant 0 : index
    %7 = vector.load %arg4[%c0_5, %c0_6] : memref<10x10xf32, #tpu.memory_space<vmem>>, vector<10x10xf32>
    %cst_7 = arith.constant dense<0.000000e+00> : vector<10x128xf32>
    %8 = tpu.matmul %7, %6, %cst_7 {dimension_numbers = #tpu.dot_dimension_numbers<[1], [0], [0], [1], [0, 0, 1, 1], [], []>} : vector<10x10xf32>, vector<10x128xf32>, vector<10x128xf32> -> vector<10x128xf32>
    %c0_8 = arith.constant 0 : index
    %c0_9 = arith.constant 0 : index
    %9 = vector.load %arg5[%c0_8, %c0_9] : memref<10x1xf32, #tpu.memory_space<vmem>>, vector<10x1xf32>
    %10 = vector.broadcast %9 : vector<10x1xf32> to vector<10x128xf32>
    %11 = arith.addf %8, %10 : vector<10x128xf32>
    %12 = math.tanh %11 : vector<10x128xf32>
    %c0_10 = arith.constant 0 : index
    %c0_11 = arith.constant 0 : index
    %13 = vector.load %arg6[%c0_10, %c0_11] : memref<4x8xf32, #tpu.memory_space<vmem>>, vector<4x8xf32>
    %cst_12 = arith.constant dense<0.000000e+00> : vector<4x128xf32>
    %14 = tpu.matmul %13, %0, %cst_12 {dimension_numbers = #tpu.dot_dimension_numbers<[1], [0], [0], [1], [0, 0, 1, 1], [], []>} : vector<4x8xf32>, vector<8x128xf32>, vector<4x128xf32> -> vector<4x128xf32>
    %c0_13 = arith.constant 0 : index
    %c0_14 = arith.constant 0 : index
    %15 = vector.load %arg7[%c0_13, %c0_14] : memref<4x10xf32, #tpu.memory_space<vmem>>, vector<4x10xf32>
    %cst_15 = arith.constant dense<0.000000e+00> : vector<4x128xf32>
    %16 = tpu.matmul %15, %12, %cst_15 {dimension_numbers = #tpu.dot_dimension_numbers<[1], [0], [0], [1], [0, 0, 1, 1], [], []>} : vector<4x10xf32>, vector<10x128xf32>, vector<4x128xf32> -> vector<4x128xf32>
    %17 = arith.addf %14, %16 : vector<4x128xf32>
    %c0_16 = arith.constant 0 : index
    %c0_17 = arith.constant 0 : index
    %18 = vector.load %arg8[%c0_16, %c0_17] : memref<4x1xf32, #tpu.memory_space<vmem>>, vector<4x1xf32>
    %19 = vector.broadcast %18 : vector<4x1xf32> to vector<4x128xf32>
    %20 = arith.addf %17, %19 : vector<4x128xf32>
    %c0_18 = arith.constant 0 : index
    %c0_19 = arith.constant 0 : index
    %21 = vector.load %arg9[%c0_18, %c0_19] : memref<4x128xf32, #tpu.memory_space<vmem>>, vector<4x128xf32>
    tpu.vector_store %arg9[%c0_18, %c0_19], %20 {strides = array<i32>} : memref<4x128xf32, #tpu.memory_space<vmem>>, vector<4x128xf32>,
    return
  }
  func.func @transform_0(%arg0: i32) -> (i32, i32) {
    %c0_i32 = arith.constant 0 : i32
    %c0_i32_0 = arith.constant 0 : i32
    return %c0_i32, %arg0 : i32, i32
  }
  func.func @transform_1(%arg0: i32) -> (i32, i32) {
    %c0_i32 = arith.constant 0 : i32
    %c0_i32_0 = arith.constant 0 : i32
    %c0_i32_1 = arith.constant 0 : i32
    return %c0_i32, %c0_i32_0 : i32, i32
  }
  func.func @transform_2(%arg0: i32) -> (i32, i32) {
    %c0_i32 = arith.constant 0 : i32
    %c0_i32_0 = arith.constant 0 : i32
    %c0_i32_1 = arith.constant 0 : i32
    return %c0_i32, %c0_i32_0 : i32, i32
  }
  func.func @transform_3(%arg0: i32) -> (i32, i32) {
    %c0_i32 = arith.constant 0 : i32
    %c0_i32_0 = arith.constant 0 : i32
    %c0_i32_1 = arith.constant 0 : i32
    return %c0_i32, %c0_i32_0 : i32, i32
  }
  func.func @transform_4(%arg0: i32) -> (i32, i32) {
    %c0_i32 = arith.constant 0 : i32
    %c0_i32_0 = arith.constant 0 : i32
    %c0_i32_1 = arith.constant 0 : i32
    return %c0_i32, %c0_i32_0 : i32, i32
  }
  func.func @transform_5(%arg0: i32) -> (i32, i32) {
    %c0_i32 = arith.constant 0 : i32
    %c0_i32_0 = arith.constant 0 : i32
    %c0_i32_1 = arith.constant 0 : i32
    return %c0_i32, %c0_i32_0 : i32, i32
  }
  func.func @transform_6(%arg0: i32) -> (i32, i32) {
    %c0_i32 = arith.constant 0 : i32
    %c0_i32_0 = arith.constant 0 : i32
    %c0_i32_1 = arith.constant 0 : i32
    return %c0_i32, %c0_i32_0 : i32, i32
  }
  func.func @transform_7(%arg0: i32) -> (i32, i32) {
    %c0_i32 = arith.constant 0 : i32
    %c0_i32_0 = arith.constant 0 : i32
    %c0_i32_1 = arith.constant 0 : i32
    return %c0_i32, %c0_i32_0 : i32, i32
  }
  func.func @transform_8(%arg0: i32) -> (i32, i32) {
    %c0_i32 = arith.constant 0 : i32
    %c0_i32_0 = arith.constant 0 : i32
    return %c0_i32, %arg0 : i32, i32
  }
}

</mosaic_0001>

<llo_original>
// kernel: qnetwork_forward.1
$region0: #{qnetwork_forward.1}
  #allocation0 [shape = 'u32[]', space=smem, size = 0x4, offset = 0x4, fixed_abs, tag = 'smem constant byte address 0x4 - core index']
  #allocation1 [shape = 'u32[72,128]{1,0:T(1,128)}', space=vmem, size = 0x9000, scoped, tag = 'internal scratch']
  %s0 = inlined_call_operand.vmem [shape: f32[8,128], index: 0, kind: input, shape index: {}]
  %s1 = inlined_call_operand.vmem [shape: f32[10,8], index: 1, kind: input, shape index: {}]
  %s2 = inlined_call_operand.vmem [shape: f32[10,1], index: 2, kind: input, shape index: {}]
  %s3 = inlined_call_operand.vmem [shape: f32[10,10], index: 3, kind: input, shape index: {}]
  %s4 = inlined_call_operand.vmem [shape: f32[10,1], index: 4, kind: input, shape index: {}]
  %s5 = inlined_call_operand.vmem [shape: f32[4,8], index: 5, kind: input, shape index: {}]
  %s6 = inlined_call_operand.vmem [shape: f32[4,10], index: 6, kind: input, shape index: {}]
  %s7 = inlined_call_operand.vmem [shape: f32[4,1], index: 7, kind: input, shape index: {}]
  %s8 = inlined_call_operand.vmem [shape: f32[4,128], index: 8, kind: output, shape index: {}]
  %s9 = sld [smem:[#allocation0]]
  $region42: #{qnetwork_forward.1} parent=0
    _
  %s11 = ssub.s32 1, %s9
  %s12 = scalar_select 0, %s11, %s9
  // Predicated region
  $region2: #{qnetwork_forward.1} parent=0 // pred_check
    _
  $region3: #{qnetwork_forward.1} parent=0 // pred_check_branch
    %14 = sbr.rel (0) target = $region5
  $region4: #{qnetwork_forward.1} parent=0 // pred_region
    _
  $region5: #{qnetwork_forward.1} parent=0 // pred_fallthru
    _
  // Predicated region
  $region6: #{qnetwork_forward.1} parent=0 // pred_check
    _
  $region7: #{qnetwork_forward.1} parent=0 // pred_check_branch
    %16 = sbr.rel (0) target = $region9
  $region8: #{qnetwork_forward.1} parent=0 // pred_region
    _
  $region9: #{qnetwork_forward.1} parent=0 // pred_fallthru
    _
  // Predicated region
  $region10: #{qnetwork_forward.1} parent=0 // pred_check
    _
  $region11: #{qnetwork_forward.1} parent=0 // pred_check_branch
    %18 = sbr.rel (0) target = $region13
  $region12: #{qnetwork_forward.1} parent=0 // pred_region
    _
  $region13: #{qnetwork_forward.1} parent=0 // pred_fallthru
    _
  // Predicated region
  $region14: #{qnetwork_forward.1} parent=0 // pred_check
    _
  $region15: #{qnetwork_forward.1} parent=0 // pred_check_branch
    %20 = sbr.rel (0) target = $region17
  $region16: #{qnetwork_forward.1} parent=0 // pred_region
    _
  $region17: #{qnetwork_forward.1} parent=0 // pred_fallthru
    _
  // Predicated region
  $region18: #{qnetwork_forward.1} parent=0 // pred_check
    _
  $region19: #{qnetwork_forward.1} parent=0 // pred_check_branch
    %22 = sbr.rel (0) target = $region21
  $region20: #{qnetwork_forward.1} parent=0 // pred_region
    _
  $region21: #{qnetwork_forward.1} parent=0 // pred_fallthru
    _
  // Predicated region
  $region22: #{qnetwork_forward.1} parent=0 // pred_check
    _
  $region23: #{qnetwork_forward.1} parent=0 // pred_check_branch
    %24 = sbr.rel (0) target = $region25
  $region24: #{qnetwork_forward.1} parent=0 // pred_region
    _
  $region25: #{qnetwork_forward.1} parent=0 // pred_fallthru
    _
  // Predicated region
  $region26: #{qnetwork_forward.1} parent=0 // pred_check
    _
  $region27: #{qnetwork_forward.1} parent=0 // pred_check_branch
    %26 = sbr.rel (0) target = $region29
  $region28: #{qnetwork_forward.1} parent=0 // pred_region
    _
  $region29: #{qnetwork_forward.1} parent=0 // pred_fallthru
    _
  // Predicated region
  $region30: #{qnetwork_forward.1} parent=0 // pred_check
    _
  $region31: #{qnetwork_forward.1} parent=0 // pred_check_branch
    %28 = sbr.rel (0) target = $region33
  $region32: #{qnetwork_forward.1} parent=0 // pred_region
    _
  $region33: #{qnetwork_forward.1} parent=0 // pred_fallthru
    _
  %v29 = vld [vmem:[%s0] sm:$0xff]
  %v30 = vld [vmem:[%s1] sm:$0xff]
  %v31 = vld [vmem:[%s1 + $0x8] sm:$0x3]
  %v32 = vld [vmem:[%s2] sm:$0xff]
  %v33 = vld [vmem:[%s2 + $0x8] sm:$0x3]
  %35 = vset.pattern.permute.xlu0 0
  %36 = vperm.xlu0 %35, %v32
  %v37 = vpop.permute.xlu0 %36
  %40 = vset.pattern.permute.xlu0 0
  %41 = vperm.xlu0 %40, %v33
  %v42 = vpop.permute.xlu0 %41
  %vm44 = vcmask 64512
  %v46 = vsel %vm44, %v30, 0
  %v49 = vsel %vm44, %v31, 0
  %51 = vmatpush.msra.mxu0 0.0
  %52 = vmatpush.msra.mxu0 0.0
  %53 = vmatpush.msra.mxu0 0.0
  %54 = vmatpush.msra.mxu0 0.0
  %55 = vmatpush.msra.mxu0 0.0
  %56 = vmatpush.msra.mxu0 0.0
  %57 = vmatpush.msra.mxu0 0.0
  %58 = vmatpush.msra.mxu0 0.0
  %59 = vmatpush.msra.mxu0 0.0
  %60 = vmatpush.msra.mxu0 0.0
  %61 = vmatpush.msra.mxu0 0.0
  %62 = vmatpush.msra.mxu0 0.0
  %63 = vmatpush.msra.mxu0 0.0
  %64 = vmatpush.msra.mxu0 0.0
  %65 = vmatpush.msra.mxu0 0.0
  %66 = vmatpush.msra.mxu0 %v29
  %67 = vmatmul.f32.gmra.mxu0 %v46
  %v68 = vpop.f32.mrf.mxu0
  %v69 = vadd.f32 %v37, %v68
  %70 = vmatmul.f32.gmra.mxu0 %v49
  %v71 = vpop.f32.mrf.mxu0
  %v72 = vadd.f32 %v42, %v71
  %73 = vdwg.mxu0
  %v74 = vtanh.pop %v69
  %v75 = vtanh.pop %v72
  %v76 = vld [vmem:[%s3] sm:$0xff]
  %v77 = vld [vmem:[%s3 + $0x8] sm:$0x3]
  %v78 = vld [vmem:[%s4] sm:$0xff]
  %v79 = vld [vmem:[%s4 + $0x8] sm:$0x3]
  %81 = vset.pattern.permute.xlu0 0
  %82 = vperm.xlu0 %81, %v78
  %v83 = vpop.permute.xlu0 %82
  %86 = vset.pattern.permute.xlu0 0
  %87 = vperm.xlu0 %86, %v79
  %v88 = vpop.permute.xlu0 %87
  %vm90 = vcmask 80896
  %v92 = vsel %vm90, %v76, 0
  %v95 = vsel %vm90, %v77, 0
  %vm97 = vcmask 1041408
  %v99 = vsel %vm97, %v75, 0
  %101 = vmatpush.msra.mxu0 0.0
  %102 = vmatpush.msra.mxu0 0.0
  %103 = vmatpush.msra.mxu0 0.0
  %104 = vmatpush.msra.mxu0 0.0
  %105 = vmatpush.msra.mxu0 0.0
  %106 = vmatpush.msra.mxu0 0.0
  %107 = vmatpush.msra.mxu0 0.0
  %108 = vmatpush.msra.mxu0 0.0
  %109 = vmatpush.msra.mxu0 0.0
  %110 = vmatpush.msra.mxu0 0.0
  %111 = vmatpush.msra.mxu0 0.0
  %112 = vmatpush.msra.mxu0 0.0
  %113 = vmatpush.msra.mxu0 0.0
  %114 = vmatpush.msra.mxu0 0.0
  %115 = vmatpush.msra.mxu0 %v99
  %116 = vmatpush.msra.mxu0 %v74
  %117 = vmatmul.f32.gmra.mxu0 %v92
  %v118 = vpop.f32.mrf.mxu0
  %v119 = vadd.f32 %v83, %v118
  %120 = vmatmul.f32.gmra.mxu0 %v95
  %v121 = vpop.f32.mrf.mxu0
  %v122 = vadd.f32 %v88, %v121
  %123 = vdwg.mxu0
  %v124 = vtanh.pop %v119
  %v125 = vtanh.pop %v122
  %v126 = vld [vmem:[%s5] sm:$0xf]
  %v127 = vld [vmem:[%s6] sm:$0xf]
  %v129 = vsel %vm90, %v127, 0
  %v132 = vsel %vm97, %v125, 0
  %134 = vmatpush.msra.mxu0 0.0
  %135 = vmatpush.msra.mxu0 0.0
  %136 = vmatpush.msra.mxu0 0.0
  %137 = vmatpush.msra.mxu0 0.0
  %138 = vmatpush.msra.mxu0 0.0
  %139 = vmatpush.msra.mxu0 0.0
  %140 = vmatpush.msra.mxu0 0.0
  %141 = vmatpush.msra.mxu0 0.0
  %142 = vmatpush.msra.mxu0 0.0
  %143 = vmatpush.msra.mxu0 0.0
  %144 = vmatpush.msra.mxu0 0.0
  %145 = vmatpush.msra.mxu0 0.0
  %146 = vmatpush.msra.mxu0 0.0
  %147 = vmatpush.msra.mxu0 0.0
  %148 = vmatpush.msra.mxu0 %v132
  %149 = vmatpush.msra.mxu0 %v124
  %150 = vmatmul.f32.gmra.mxu0 %v129
  %v151 = vpop.f32.mrf.mxu0
  %v152 = vadd.f32 0.0, %v151
  %153 = vdwg.mxu0
  %v155 = vsel %vm44, %v126, 0
  %157 = vmatpush.msra.mxu0 0.0
  %158 = vmatpush.msra.mxu0 0.0
  %159 = vmatpush.msra.mxu0 0.0
  %160 = vmatpush.msra.mxu0 0.0
  %161 = vmatpush.msra.mxu0 0.0
  %162 = vmatpush.msra.mxu0 0.0
  %163 = vmatpush.msra.mxu0 0.0
  %164 = vmatpush.msra.mxu0 0.0
  %165 = vmatpush.msra.mxu0 0.0
  %166 = vmatpush.msra.mxu0 0.0
  %167 = vmatpush.msra.mxu0 0.0
  %168 = vmatpush.msra.mxu0 0.0
  %169 = vmatpush.msra.mxu0 0.0
  %170 = vmatpush.msra.mxu0 0.0
  %171 = vmatpush.msra.mxu0 0.0
  %172 = vmatpush.msra.mxu0 %v29
  %173 = vmatmul.f32.gmra.mxu0 %v155
  %v174 = vpop.f32.mrf.mxu0
  %v175 = vadd.f32 %v152, %v174
  %176 = vdwg.mxu0
  %v177 = vld [vmem:[%s7] sm:$0xf]
  %179 = vset.pattern.permute.xlu0 0
  %180 = vperm.xlu0 %179, %v177
  %v181 = vpop.permute.xlu0 %180
  %v183 = vadd.f32 %v175, %v181
  %184 = vst [vmem:[%s8] sm:$0xf] %v183
  // Predicated region
  $region34: #{qnetwork_forward.1} parent=0 // pred_check
    _
  $region35: #{qnetwork_forward.1} parent=0 // pred_check_branch
    %186 = sbr.rel (0) target = $region37
  $region36: #{qnetwork_forward.1} parent=0 // pred_region
    _
  $region37: #{qnetwork_forward.1} parent=0 // pred_fallthru
    _
  // Predicated region
  $region38: #{qnetwork_forward.1} parent=0 // pred_check
    _
  $region39: #{qnetwork_forward.1} parent=0 // pred_check_branch
    %188 = sbr.rel (0) target = $region41
  $region40: #{qnetwork_forward.1} parent=0 // pred_region
    _
  $region41: #{qnetwork_forward.1} parent=0 // pred_fallthru
    _

</llo_original>
